<compile_context>
chip_gen: v7x
topology: tpu7x:2x2x1
jax: 0.10.0
libtpu: 0.0.40
codegen_flags: <defaults>
</compile_context>

<pallas_src>
import time

import numpy as np
import jax
import jax.numpy as jnp
from jax.experimental import pallas as pl
from jax.experimental.pallas import tpu as pltpu


# ----------------------------------------------------------------------------
# Fused kernel: both 3x3 convs + folded BN + residual + ReLUs, whole batch in
# one step.  Layout is "flat" (rows = N*H, lanes = W*C), lane-dense (W*C = 128).
# ----------------------------------------------------------------------------
def _make_fused_kernel(N, H, W, Cin, Cout):
    WC_in, WC_out = W * Cin, W * Cout
    HP = H + 2                                     # per-image H-padded strip height

    def kernel(x_ref, band1_ref, band2_ref, b1_ref, b2_ref, o_ref,
               xpad_ref, lhs_ref):
        # x_ref:    (N*H, W*Cin)      f32   whole batch, lane-dense
        # band*:    (3*W*Cin, W*Cout) bf16  dy taps fused along K; BN scale folded in
        # b*:       (1, W*Cout)       f32   folded BN bias, tiled per lane
        # o_ref:    (N*H, W*Cout)     f32
        # xpad_ref: (N*(H+2), W*Cin)  f32   scratch: per-image zero-halo strips
        # lhs_ref:  (N*H, 3*W*Cin)    bf16  scratch: stacked dy views (matmul LHS)

        # Zero ONLY the 2*N halo rows; the data rows are fully overwritten below.
        zero_row = jnp.zeros((1, WC_in), jnp.float32)
        for n in range(N):                                   # static unroll, N small
            xpad_ref[pl.ds(n * HP, 1), :] = zero_row
            xpad_ref[pl.ds(n * HP + H + 1, 1), :] = zero_row

        def fill_data_rows(vals):                            # vals: (N*H, W*C) f32
            for n in range(N):
                xpad_ref[pl.ds(n * HP + 1, H), :] = vals[n * H:(n + 1) * H]

        def build_lhs():
            # lhs[:, dy*WC:(dy+1)*WC] = dy-shifted padded rows.  All lhs stores are
            # sublane/lane aligned (row offsets n*H, lane offsets dy*W*C); only the
            # f32 xpad reads are sublane-misaligned, which Mosaic handles robustly
            # for 32-bit types.  (xpad is kept f32 on purpose: it trades a handful
            # of tiny f32->bf16 pack ops for avoiding misaligned sublane slicing of
            # a packed bf16 scratch.)
            for n in range(N):
                for dy in range(3):                          # static unroll
                    lhs_ref[pl.ds(n * H, H), pl.ds(dy * WC_in, WC_in)] = (
                        xpad_ref[pl.ds(n * HP + dy, H), :].astype(jnp.bfloat16))

        def conv(band_ref):
            # ONE MXU matmul per conv: M=N*H, K=3*W*Cin, N=W*Cout, f32 accumulation.
            return jnp.dot(lhs_ref[...], band_ref[...],
                           preferred_element_type=jnp.float32)

        x = x_ref[...]                                  # f32 input kept for residual
        fill_data_rows(x)
        build_lhs()
        # conv1 + bn1 (scale folded into weights, bias added here) + relu
        mid = jnp.maximum(conv(band1_ref) + b1_ref[...], 0.0)       # (N*H, W*C) f32
        fill_data_rows(mid)                             # relies on W*Cin == W*Cout
        build_lhs()
        # conv2 + bn2 + residual (input still vreg/VMEM resident) + relu
        out = jnp.maximum(conv(band2_ref) + b2_ref[...] + x, 0.0)
        o_ref[...] = out                                # plain lane-dense store

    return kernel


# ----------------------------------------------------------------------------
# Wrapper (jitted): layout plumbing + single-step pallas_call.
# ----------------------------------------------------------------------------
def _fused_block(x_nchw, band1, band2, b1f, b2f):
    """x_nchw: (N,C,H,W) f32; band*: (3*W*C, W*C) bf16; b*: (1, W*C) f32."""
    N, C, H, W = x_nchw.shape
    WC = W * C
    x_flat = jnp.transpose(x_nchw, (0, 2, 3, 1)).reshape(N * H, WC)   # lane-dense

    out_flat = pl.pallas_call(
        _make_fused_kernel(N, H, W, C, C),
        out_shape=jax.ShapeDtypeStruct((N * H, WC), jnp.float32),
        grid=(1,),                                       # single step, whole batch
        in_specs=[
            pl.BlockSpec((N * H, WC), lambda i: (0, 0)),
            pl.BlockSpec((3 * WC, WC), lambda i: (0, 0)),
            pl.BlockSpec((3 * WC, WC), lambda i: (0, 0)),
            pl.BlockSpec((1, WC), lambda i: (0, 0)),
            pl.BlockSpec((1, WC), lambda i: (0, 0)),
        ],
        out_specs=pl.BlockSpec((N * H, WC), lambda i: (0, 0)),
        scratch_shapes=[
            pltpu.VMEM((N * (H + 2), WC), jnp.float32),   # H-padded image / mid
            pltpu.VMEM((N * H, 3 * WC), jnp.bfloat16),    # stacked dy-tap LHS
        ],
    )(x_flat, band1, band2, b1f, b2f)

    return jnp.transpose(out_flat.reshape(N, H, W, C), (0, 3, 1, 2))  # back to NCHW


# ----------------------------------------------------------------------------
# Banded (shifted block-diagonal) weight construction -- done ONCE, not per call.
# ----------------------------------------------------------------------------
def _banded_fused(w933, W):
    """w933: (9, Cin, Cout) = (ky*3+kx, ci, co), BN scale already folded in.
    Returns (3*W*Cin, W*Cout) bf16: the kx shift + W zero-padding folded into a
    shifted block-diagonal matrix, with the 3 ky taps stacked along K."""
    Cin, Cout = w933.shape[1], w933.shape[2]
    w4 = w933.reshape(3, 3, Cin, Cout)                        # (ky, kx, ci, co)
    shifts = jnp.stack([jnp.eye(W, k=1 - dx, dtype=w933.dtype) for dx in range(3)])
    m = jnp.einsum('xwv,yxio->ywivo', shifts, w4)             # (3, W, Cin, W, Cout)
    return m.reshape(3 * W * Cin, W * Cout).astype(jnp.bfloat16)


def _fold_bn(gamma, beta, mean, var, eps=1e-5):
    scale = gamma / jnp.sqrt(var + eps)
    bias = beta - mean * scale
    return scale, bias


# ----------------------------------------------------------------------------
# Module wrapper (deterministic parameter init, PyTorch NCHW interface)
# ----------------------------------------------------------------------------
class ModifiedBasicBlockPallas:
    expansion = 1

    def __init__(self, inplanes, planes, stride=1, downsample=None, seed=0):
        # TODO(synk): stride > 1 and the `downsample` branch are not implemented
        # (the module's default config is stride=1, downsample=None).
        assert stride == 1 and downsample is None and inplanes == planes

        key = jax.random.PRNGKey(seed)
        ks = jax.random.split(key, 10)

        # conv weights, PyTorch layout (Cout, Cin, 3, 3) -> (9, Cin, Cout)
        w1 = 0.1 * jax.random.normal(ks[0], (planes, inplanes, 3, 3), jnp.float32)
        w2 = 0.1 * jax.random.normal(ks[1], (planes, planes, 3, 3), jnp.float32)
        w1_933 = jnp.transpose(w1, (2, 3, 1, 0)).reshape(9, inplanes, planes)
        w2_933 = jnp.transpose(w2, (2, 3, 1, 0)).reshape(9, planes, planes)

        # BatchNorm params / running stats (deterministic, non-trivial), folded.
        g1 = 1.0 + 0.1 * jax.random.normal(ks[2], (planes,), jnp.float32)
        be1 = 0.1 * jax.random.normal(ks[3], (planes,), jnp.float32)
        m1 = 0.1 * jax.random.normal(ks[4], (planes,), jnp.float32)
        v1 = 1.0 + 0.1 * jnp.abs(jax.random.normal(ks[5], (planes,), jnp.float32))
        g2 = 1.0 + 0.1 * jax.random.normal(ks[6], (planes,), jnp.float32)
        be2 = 0.1 * jax.random.normal(ks[7], (planes,), jnp.float32)
        m2 = 0.1 * jax.random.normal(ks[8], (planes,), jnp.float32)
        v2 = 1.0 + 0.1 * jnp.abs(jax.random.normal(ks[9], (planes,), jnp.float32))
        s1, bias1 = _fold_bn(g1, be1, m1, v1)
        s2, bias2 = _fold_bn(g2, be2, m2, v2)

        # Fold BN scale into the conv weights; only the bias is added in-kernel.
        self.w1_933 = w1_933 * s1[None, None, :]
        self.w2_933 = w2_933 * s2[None, None, :]
        self.b1 = bias1
        self.b2 = bias2

        self._fused = jax.jit(_fused_block)
        self._packed = {}   # W -> (band1, band2, b1f, b2f); built once per width

    def _get_packed(self, W):
        # Banded weights / tiled biases depend on the spatial width W, which the
        # PyTorch-style __init__ does not know; build them ONCE per W (outside the
        # timed region) and cache the device arrays.
        if W not in self._packed:
            band1 = _banded_fused(self.w1_933, W)
            band2 = _banded_fused(self.w2_933, W)
            b1f = jnp.tile(self.b1.reshape(1, -1), (1, W))    # (1, W*C): [b,b,...,b]
            b2f = jnp.tile(self.b2.reshape(1, -1), (1, W))
            self._packed[W] = tuple(jax.block_until_ready(a)
                                    for a in (band1, band2, b1f, b2f))
        return self._packed[W]

    def forward(self, x_nchw, timing_repeats=10):
        x = jnp.asarray(x_nchw, jnp.float32)
        W = x.shape[-1]
        band1, band2, b1f, b2f = self._get_packed(W)

        out = self._fused(x, band1, band2, b1f, b2f)
        out = jax.block_until_ready(out)          # compile + warm-up happens here

        # TODO(synk): time.perf_counter around a µs-scale dispatch still overcounts;
        # true kernel time needs an xprof trace.  min-over-repeats reduces one-sided
        # host jitter, and weight packing is excluded from this loop.
        times = []
        for _ in range(timing_repeats):
            t0 = time.perf_counter()
            jax.block_until_ready(self._fused(x, band1, band2, b1f, b2f))
            times.append(time.perf_counter() - t0)
        t_ms = min(times) * 1000.0

        # TODO(synk): conv1 and conv2 execute inside ONE fused Pallas kernel, so
        # per-conv attribution needs a trace; report the fused wall time split 50/50
        # across the two conv entries of time_arr (matching the 2-entry contract).
        time_arr = [0.5 * t_ms, 0.5 * t_ms]
        return out, time_arr


# ----------------------------------------------------------------------------
# Pure-JAX reference (lax conv, same bf16 operands / f32 accumulation) for checking
# ----------------------------------------------------------------------------
def _reference_forward(x_nchw, blk):
    x = jnp.transpose(x_nchw, (0, 2, 3, 1)).astype(jnp.float32)
    identity = x

    def conv(inp_f32, w933):
        cin, cout = w933.shape[1], w933.shape[2]
        w = w933.astype(jnp.bfloat16).reshape(3, 3, cin, cout)        # HWIO
        return jax.lax.conv_general_dilated(
            inp_f32.astype(jnp.bfloat16), w, window_strides=(1, 1),
            padding=((1, 1), (1, 1)),
            dimension_numbers=("NHWC", "HWIO", "NHWC"),
            preferred_element_type=jnp.float32)

    out = jnp.maximum(conv(x, blk.w1_933) + blk.b1.reshape(1, 1, 1, -1), 0.0)
    out = jnp.maximum(conv(out, blk.w2_933) + blk.b2.reshape(1, 1, 1, -1) + identity, 0.0)
    return jnp.transpose(out, (0, 3, 1, 2))


if __name__ == "__main__":
    N, C, H, W = 2, 8, 16, 16          # inplanes == planes == 8 -> W*C = 128 lanes
    key = jax.random.PRNGKey(0)
    x = jax.random.normal(key, (N, C, H, W), jnp.float32)

    block = ModifiedBasicBlockPallas(inplanes=C, planes=C, stride=1, seed=0)

    out, time_arr = block.forward(x)
    out = jax.block_until_ready(out)

    ref = jax.block_until_ready(_reference_forward(x, block))
    np.testing.assert_allclose(np.asarray(out), np.asarray(ref),
                               rtol=2e-3, atol=2e-3)
    assert out.shape == (N, C, H, W) and len(time_arr) == 2

    print("KERNEL_OK")
</pallas_src>

<mosaic_0001>
module attributes {stable_mosaic.version = 11 : i64} {
  func.func @kernel(%arg0: i32, %arg1: memref<32x128xf32, #tpu.memory_space<vmem>>, %arg2: memref<384x128xbf16, #tpu.memory_space<vmem>>, %arg3: memref<384x128xbf16, #tpu.memory_space<vmem>>, %arg4: memref<1x128xf32, #tpu.memory_space<vmem>>, %arg5: memref<1x128xf32, #tpu.memory_space<vmem>>, %arg6: memref<32x128xf32, #tpu.memory_space<vmem>>, %arg7: memref<36x128xf32, #tpu.memory_space<vmem>>, %arg8: memref<32x384xbf16, #tpu.memory_space<vmem>>) attributes {dimension_semantics = [#tpu.dimension_semantics<arbitrary>], iteration_bounds = array<i64: 1>, scalar_prefetch = 0 : i64, scratch_operands = 2 : i64, tpu.core_type = #tpu.core_type<tc>, window_params = [{pipeline_mode = #tpu.pipeline_mode<synchronous>, transform_indices = @transform_0, window_bounds = array<i64: 32, 128>}, {pipeline_mode = #tpu.pipeline_mode<synchronous>, transform_indices = @transform_1, window_bounds = array<i64: 384, 128>}, {pipeline_mode = #tpu.pipeline_mode<synchronous>, transform_indices = @transform_2, window_bounds = array<i64: 384, 128>}, {pipeline_mode = #tpu.pipeline_mode<synchronous>, transform_indices = @transform_3, window_bounds = array<i64: 1, 128>}, {pipeline_mode = #tpu.pipeline_mode<synchronous>, transform_indices = @transform_4, window_bounds = array<i64: 1, 128>}, {pipeline_mode = #tpu.pipeline_mode<synchronous>, transform_indices = @transform_5, window_bounds = array<i64: 32, 128>}]} {
    %cst = arith.constant 0.000000e+00 : f32
    %0 = vector.broadcast %cst : f32 to vector<1x128xf32>
    %c0 = arith.constant 0 : index
    %c0_0 = arith.constant 0 : index
    %1 = vector.load %arg7[%c0, %c0_0] : memref<36x128xf32, #tpu.memory_space<vmem>>, vector<1x128xf32>
    tpu.vector_store %arg7[%c0, %c0_0], %0 {strides = array<i32>} : memref<36x128xf32, #tpu.memory_space<vmem>>, vector<1x128xf32>,
    %c17 = arith.constant 17 : index
    %c0_1 = arith.constant 0 : index
    %2 = vector.load %arg7[%c17, %c0_1] : memref<36x128xf32, #tpu.memory_space<vmem>>, vector<1x128xf32>
    tpu.vector_store %arg7[%c17, %c0_1], %0 {strides = array<i32>} : memref<36x128xf32, #tpu.memory_space<vmem>>, vector<1x128xf32>,
    %c18 = arith.constant 18 : index
    %c0_2 = arith.constant 0 : index
    %3 = vector.load %arg7[%c18, %c0_2] : memref<36x128xf32, #tpu.memory_space<vmem>>, vector<1x128xf32>
    tpu.vector_store %arg7[%c18, %c0_2], %0 {strides = array<i32>} : memref<36x128xf32, #tpu.memory_space<vmem>>, vector<1x128xf32>,
    %c35 = arith.constant 35 : index
    %c0_3 = arith.constant 0 : index
    %4 = vector.load %arg7[%c35, %c0_3] : memref<36x128xf32, #tpu.memory_space<vmem>>, vector<1x128xf32>
    tpu.vector_store %arg7[%c35, %c0_3], %0 {strides = array<i32>} : memref<36x128xf32, #tpu.memory_space<vmem>>, vector<1x128xf32>,
    %c0_4 = arith.constant 0 : index
    %c0_5 = arith.constant 0 : index
    %5 = vector.load %arg1[%c0_4, %c0_5] : memref<32x128xf32, #tpu.memory_space<vmem>>, vector<32x128xf32>
    %6 = vector.extract_strided_slice %5 {offsets = [0, 0], sizes = [16, 128], strides = [1, 1]} : vector<32x128xf32> to vector<16x128xf32>
    %c1 = arith.constant 1 : index
    %c0_6 = arith.constant 0 : index
    %7 = vector.load %arg7[%c1, %c0_6] : memref<36x128xf32, #tpu.memory_space<vmem>>, vector<16x128xf32>
    tpu.vector_store %arg7[%c1, %c0_6], %6 {strides = array<i32>} : memref<36x128xf32, #tpu.memory_space<vmem>>, vector<16x128xf32>,
    %8 = vector.extract_strided_slice %5 {offsets = [16, 0], sizes = [16, 128], strides = [1, 1]} : vector<32x128xf32> to vector<16x128xf32>
    %c19 = arith.constant 19 : index
    %c0_7 = arith.constant 0 : index
    %9 = vector.load %arg7[%c19, %c0_7] : memref<36x128xf32, #tpu.memory_space<vmem>>, vector<16x128xf32>
    tpu.vector_store %arg7[%c19, %c0_7], %8 {strides = array<i32>} : memref<36x128xf32, #tpu.memory_space<vmem>>, vector<16x128xf32>,
    %c0_8 = arith.constant 0 : index
    %c0_9 = arith.constant 0 : index
    %10 = vector.load %arg7[%c0_8, %c0_9] : memref<36x128xf32, #tpu.memory_space<vmem>>, vector<16x128xf32>
    %11 = arith.truncf %10 : vector<16x128xf32> to vector<16x128xbf16>
    %c0_10 = arith.constant 0 : index
    %c0_11 = arith.constant 0 : index
    %12 = vector.load %arg8[%c0_10, %c0_11] : memref<32x384xbf16, #tpu.memory_space<vmem>>, vector<16x128xbf16>
    tpu.vector_store %arg8[%c0_10, %c0_11], %11 {strides = array<i32>} : memref<32x384xbf16, #tpu.memory_space<vmem>>, vector<16x128xbf16>,
    %c1_12 = arith.constant 1 : index
    %c0_13 = arith.constant 0 : index
    %13 = vector.load %arg7[%c1_12, %c0_13] : memref<36x128xf32, #tpu.memory_space<vmem>>, vector<16x128xf32>
    %14 = arith.truncf %13 : vector<16x128xf32> to vector<16x128xbf16>
    %c0_14 = arith.constant 0 : index
    %c128 = arith.constant 128 : index
    %15 = vector.load %arg8[%c0_14, %c128] : memref<32x384xbf16, #tpu.memory_space<vmem>>, vector<16x128xbf16>
    tpu.vector_store %arg8[%c0_14, %c128], %14 {strides = array<i32>} : memref<32x384xbf16, #tpu.memory_space<vmem>>, vector<16x128xbf16>,
    %c2 = arith.constant 2 : index
    %c0_15 = arith.constant 0 : index
    %16 = vector.load %arg7[%c2, %c0_15] : memref<36x128xf32, #tpu.memory_space<vmem>>, vector<16x128xf32>
    %17 = arith.truncf %16 : vector<16x128xf32> to vector<16x128xbf16>
    %c0_16 = arith.constant 0 : index
    %c256 = arith.constant 256 : index
    %18 = vector.load %arg8[%c0_16, %c256] : memref<32x384xbf16, #tpu.memory_space<vmem>>, vector<16x128xbf16>
    tpu.vector_store %arg8[%c0_16, %c256], %17 {strides = array<i32>} : memref<32x384xbf16, #tpu.memory_space<vmem>>, vector<16x128xbf16>,
    %c18_17 = arith.constant 18 : index
    %c0_18 = arith.constant 0 : index
    %19 = vector.load %arg7[%c18_17, %c0_18] : memref<36x128xf32, #tpu.memory_space<vmem>>, vector<16x128xf32>
    %20 = arith.truncf %19 : vector<16x128xf32> to vector<16x128xbf16>
    %c16 = arith.constant 16 : index
    %c0_19 = arith.constant 0 : index
    %21 = vector.load %arg8[%c16, %c0_19] : memref<32x384xbf16, #tpu.memory_space<vmem>>, vector<16x128xbf16>
    tpu.vector_store %arg8[%c16, %c0_19], %20 {strides = array<i32>} : memref<32x384xbf16, #tpu.memory_space<vmem>>, vector<16x128xbf16>,
    %c19_20 = arith.constant 19 : index
    %c0_21 = arith.constant 0 : index
    %22 = vector.load %arg7[%c19_20, %c0_21] : memref<36x128xf32, #tpu.memory_space<vmem>>, vector<16x128xf32>
    %23 = arith.truncf %22 : vector<16x128xf32> to vector<16x128xbf16>
    %c16_22 = arith.constant 16 : index
    %c128_23 = arith.constant 128 : index
    %24 = vector.load %arg8[%c16_22, %c128_23] : memref<32x384xbf16, #tpu.memory_space<vmem>>, vector<16x128xbf16>
    tpu.vector_store %arg8[%c16_22, %c128_23], %23 {strides = array<i32>} : memref<32x384xbf16, #tpu.memory_space<vmem>>, vector<16x128xbf16>,
    %c20 = arith.constant 20 : index
    %c0_24 = arith.constant 0 : index
    %25 = vector.load %arg7[%c20, %c0_24] : memref<36x128xf32, #tpu.memory_space<vmem>>, vector<16x128xf32>
    %26 = arith.truncf %25 : vector<16x128xf32> to vector<16x128xbf16>
    %c16_25 = arith.constant 16 : index
    %c256_26 = arith.constant 256 : index
    %27 = vector.load %arg8[%c16_25, %c256_26] : memref<32x384xbf16, #tpu.memory_space<vmem>>, vector<16x128xbf16>
    tpu.vector_store %arg8[%c16_25, %c256_26], %26 {strides = array<i32>} : memref<32x384xbf16, #tpu.memory_space<vmem>>, vector<16x128xbf16>,
    %c0_27 = arith.constant 0 : index
    %c0_28 = arith.constant 0 : index
    %28 = vector.load %arg8[%c0_27, %c0_28] : memref<32x384xbf16, #tpu.memory_space<vmem>>, vector<32x384xbf16>
    %c0_29 = arith.constant 0 : index
    %c0_30 = arith.constant 0 : index
    %29 = vector.load %arg2[%c0_29, %c0_30] : memref<384x128xbf16, #tpu.memory_space<vmem>>, vector<384x128xbf16>
    %cst_31 = arith.constant dense<0.000000e+00> : vector<32x128xf32>
    %30 = tpu.matmul %28, %29, %cst_31 {dimension_numbers = #tpu.dot_dimension_numbers<[1], [0], [0], [1], [0, 0, 1, 1], [], []>} : vector<32x384xbf16>, vector<384x128xbf16>, vector<32x128xf32> -> vector<32x128xf32>
    %c0_32 = arith.constant 0 : index
    %c0_33 = arith.constant 0 : index
    %31 = vector.load %arg4[%c0_32, %c0_33] : memref<1x128xf32, #tpu.memory_space<vmem>>, vector<1x128xf32>
    %32 = vector.broadcast %31 : vector<1x128xf32> to vector<32x128xf32>
    %33 = arith.addf %30, %32 : vector<32x128xf32>
    %cst_34 = arith.constant 0.000000e+00 : f32
    %34 = vector.broadcast %cst_34 : f32 to vector<32x128xf32>
    %35 = arith.maximumf %33, %34 : vector<32x128xf32>
    %36 = vector.extract_strided_slice %35 {offsets = [0, 0], sizes = [16, 128], strides = [1, 1]} : vector<32x128xf32> to vector<16x128xf32>
    %c1_35 = arith.constant 1 : index
    %c0_36 = arith.constant 0 : index
    %37 = vector.load %arg7[%c1_35, %c0_36] : memref<36x128xf32, #tpu.memory_space<vmem>>, vector<16x128xf32>
    tpu.vector_store %arg7[%c1_35, %c0_36], %36 {strides = array<i32>} : memref<36x128xf32, #tpu.memory_space<vmem>>, vector<16x128xf32>,
    %38 = vector.extract_strided_slice %35 {offsets = [16, 0], sizes = [16, 128], strides = [1, 1]} : vector<32x128xf32> to vector<16x128xf32>
    %c19_37 = arith.constant 19 : index
    %c0_38 = arith.constant 0 : index
    %39 = vector.load %arg7[%c19_37, %c0_38] : memref<36x128xf32, #tpu.memory_space<vmem>>, vector<16x128xf32>
    tpu.vector_store %arg7[%c19_37, %c0_38], %38 {strides = array<i32>} : memref<36x128xf32, #tpu.memory_space<vmem>>, vector<16x128xf32>,
    %c0_39 = arith.constant 0 : index
    %c0_40 = arith.constant 0 : index
    %40 = vector.load %arg7[%c0_39, %c0_40] : memref<36x128xf32, #tpu.memory_space<vmem>>, vector<16x128xf32>
    %41 = arith.truncf %40 : vector<16x128xf32> to vector<16x128xbf16>
    %c0_41 = arith.constant 0 : index
    %c0_42 = arith.constant 0 : index
    %42 = vector.load %arg8[%c0_41, %c0_42] : memref<32x384xbf16, #tpu.memory_space<vmem>>, vector<16x128xbf16>
    tpu.vector_store %arg8[%c0_41, %c0_42], %41 {strides = array<i32>} : memref<32x384xbf16, #tpu.memory_space<vmem>>, vector<16x128xbf16>,
    %c1_43 = arith.constant 1 : index
    %c0_44 = arith.constant 0 : index
    %43 = vector.load %arg7[%c1_43, %c0_44] : memref<36x128xf32, #tpu.memory_space<vmem>>, vector<16x128xf32>
    %44 = arith.truncf %43 : vector<16x128xf32> to vector<16x128xbf16>
    %c0_45 = arith.constant 0 : index
    %c128_46 = arith.constant 128 : index
    %45 = vector.load %arg8[%c0_45, %c128_46] : memref<32x384xbf16, #tpu.memory_space<vmem>>, vector<16x128xbf16>
    tpu.vector_store %arg8[%c0_45, %c128_46], %44 {strides = array<i32>} : memref<32x384xbf16, #tpu.memory_space<vmem>>, vector<16x128xbf16>,
    %c2_47 = arith.constant 2 : index
    %c0_48 = arith.constant 0 : index
    %46 = vector.load %arg7[%c2_47, %c0_48] : memref<36x128xf32, #tpu.memory_space<vmem>>, vector<16x128xf32>
    %47 = arith.truncf %46 : vector<16x128xf32> to vector<16x128xbf16>
    %c0_49 = arith.constant 0 : index
    %c256_50 = arith.constant 256 : index
    %48 = vector.load %arg8[%c0_49, %c256_50] : memref<32x384xbf16, #tpu.memory_space<vmem>>, vector<16x128xbf16>
    tpu.vector_store %arg8[%c0_49, %c256_50], %47 {strides = array<i32>} : memref<32x384xbf16, #tpu.memory_space<vmem>>, vector<16x128xbf16>,
    %c18_51 = arith.constant 18 : index
    %c0_52 = arith.constant 0 : index
    %49 = vector.load %arg7[%c18_51, %c0_52] : memref<36x128xf32, #tpu.memory_space<vmem>>, vector<16x128xf32>
    %50 = arith.truncf %49 : vector<16x128xf32> to vector<16x128xbf16>
    %c16_53 = arith.constant 16 : index
    %c0_54 = arith.constant 0 : index
    %51 = vector.load %arg8[%c16_53, %c0_54] : memref<32x384xbf16, #tpu.memory_space<vmem>>, vector<16x128xbf16>
    tpu.vector_store %arg8[%c16_53, %c0_54], %50 {strides = array<i32>} : memref<32x384xbf16, #tpu.memory_space<vmem>>, vector<16x128xbf16>,
    %c19_55 = arith.constant 19 : index
    %c0_56 = arith.constant 0 : index
    %52 = vector.load %arg7[%c19_55, %c0_56] : memref<36x128xf32, #tpu.memory_space<vmem>>, vector<16x128xf32>
    %53 = arith.truncf %52 : vector<16x128xf32> to vector<16x128xbf16>
    %c16_57 = arith.constant 16 : index
    %c128_58 = arith.constant 128 : index
    %54 = vector.load %arg8[%c16_57, %c128_58] : memref<32x384xbf16, #tpu.memory_space<vmem>>, vector<16x128xbf16>
    tpu.vector_store %arg8[%c16_57, %c128_58], %53 {strides = array<i32>} : memref<32x384xbf16, #tpu.memory_space<vmem>>, vector<16x128xbf16>,
    %c20_59 = arith.constant 20 : index
    %c0_60 = arith.constant 0 : index
    %55 = vector.load %arg7[%c20_59, %c0_60] : memref<36x128xf32, #tpu.memory_space<vmem>>, vector<16x128xf32>
    %56 = arith.truncf %55 : vector<16x128xf32> to vector<16x128xbf16>
    %c16_61 = arith.constant 16 : index
    %c256_62 = arith.constant 256 : index
    %57 = vector.load %arg8[%c16_61, %c256_62] : memref<32x384xbf16, #tpu.memory_space<vmem>>, vector<16x128xbf16>
    tpu.vector_store %arg8[%c16_61, %c256_62], %56 {strides = array<i32>} : memref<32x384xbf16, #tpu.memory_space<vmem>>, vector<16x128xbf16>,
    %c0_63 = arith.constant 0 : index
    %c0_64 = arith.constant 0 : index
    %58 = vector.load %arg8[%c0_63, %c0_64] : memref<32x384xbf16, #tpu.memory_space<vmem>>, vector<32x384xbf16>
    %c0_65 = arith.constant 0 : index
    %c0_66 = arith.constant 0 : index
    %59 = vector.load %arg3[%c0_65, %c0_66] : memref<384x128xbf16, #tpu.memory_space<vmem>>, vector<384x128xbf16>
    %cst_67 = arith.constant dense<0.000000e+00> : vector<32x128xf32>
    %60 = tpu.matmul %58, %59, %cst_67 {dimension_numbers = #tpu.dot_dimension_numbers<[1], [0], [0], [1], [0, 0, 1, 1], [], []>} : vector<32x384xbf16>, vector<384x128xbf16>, vector<32x128xf32> -> vector<32x128xf32>
    %c0_68 = arith.constant 0 : index
    %c0_69 = arith.constant 0 : index
    %61 = vector.load %arg5[%c0_68, %c0_69] : memref<1x128xf32, #tpu.memory_space<vmem>>, vector<1x128xf32>
    %62 = vector.broadcast %61 : vector<1x128xf32> to vector<32x128xf32>
    %63 = arith.addf %60, %62 : vector<32x128xf32>
    %64 = arith.addf %63, %5 : vector<32x128xf32>
    %cst_70 = arith.constant 0.000000e+00 : f32
    %65 = vector.broadcast %cst_70 : f32 to vector<32x128xf32>
    %66 = arith.maximumf %64, %65 : vector<32x128xf32>
    %c0_71 = arith.constant 0 : index
    %c0_72 = arith.constant 0 : index
    %67 = vector.load %arg6[%c0_71, %c0_72] : memref<32x128xf32, #tpu.memory_space<vmem>>, vector<32x128xf32>
    tpu.vector_store %arg6[%c0_71, %c0_72], %66 {strides = array<i32>} : memref<32x128xf32, #tpu.memory_space<vmem>>, vector<32x128xf32>,
    return
  }
  func.func @transform_0(%arg0: i32) -> (i32, i32) {
    %c0_i32 = arith.constant 0 : i32
    %c0_i32_0 = arith.constant 0 : i32
    %c0_i32_1 = arith.constant 0 : i32
    return %c0_i32, %c0_i32_0 : i32, i32
  }
  func.func @transform_1(%arg0: i32) -> (i32, i32) {
    %c0_i32 = arith.constant 0 : i32
    %c0_i32_0 = arith.constant 0 : i32
    %c0_i32_1 = arith.constant 0 : i32
    return %c0_i32, %c0_i32_0 : i32, i32
  }
  func.func @transform_2(%arg0: i32) -> (i32, i32) {
    %c0_i32 = arith.constant 0 : i32
    %c0_i32_0 = arith.constant 0 : i32
    %c0_i32_1 = arith.constant 0 : i32
    return %c0_i32, %c0_i32_0 : i32, i32
  }
  func.func @transform_3(%arg0: i32) -> (i32, i32) {
    %c0_i32 = arith.constant 0 : i32
    %c0_i32_0 = arith.constant 0 : i32
    %c0_i32_1 = arith.constant 0 : i32
    return %c0_i32, %c0_i32_0 : i32, i32
  }
  func.func @transform_4(%arg0: i32) -> (i32, i32) {
    %c0_i32 = arith.constant 0 : i32
    %c0_i32_0 = arith.constant 0 : i32
    %c0_i32_1 = arith.constant 0 : i32
    return %c0_i32, %c0_i32_0 : i32, i32
  }
  func.func @transform_5(%arg0: i32) -> (i32, i32) {
    %c0_i32 = arith.constant 0 : i32
    %c0_i32_0 = arith.constant 0 : i32
    %c0_i32_1 = arith.constant 0 : i32
    return %c0_i32, %c0_i32_0 : i32, i32
  }
}

</mosaic_0001>

<llo_original>
// kernel: _fused_block.1
$region0: #{_fused_block.1}
  #allocation0 [shape = 'u32[]', space=smem, size = 0x4, offset = 0x4, fixed_abs, tag = 'smem constant byte address 0x4 - core index']
  #allocation1 [shape = 'u32[144,128]{1,0:T(1,128)}', space=vmem, size = 0x12000, scoped, tag = 'internal scratch']
  #allocation2 [shape = 'f32[36,128]{1,0:T(8,128)}', space=vmem, size = 0x5000, scoped, tag = 'scratch operand']
  #allocation3 [shape = 'bf16[32,384]{1,0:T(16,128)(2,1)}', space=vmem, size = 0x6000, scoped, tag = 'scratch operand']
  %s0 = inlined_call_operand.vmem [shape: f32[32,128], index: 0, kind: input, shape index: {}]
  %s1 = inlined_call_operand.vmem [shape: bf16[384,128], index: 1, kind: input, shape index: {}]
  %s2 = inlined_call_operand.vmem [shape: bf16[384,128], index: 2, kind: input, shape index: {}]
  %s3 = inlined_call_operand.vmem [shape: f32[1,128], index: 3, kind: input, shape index: {}]
  %s4 = inlined_call_operand.vmem [shape: f32[1,128], index: 4, kind: input, shape index: {}]
  %s5 = inlined_call_operand.vmem [shape: f32[32,128], index: 5, kind: output, shape index: {}]
  %s6 = sld [smem:[#allocation0]]
  $region30: #{_fused_block.1} parent=0
    _
  %s8 = ssub.s32 1, %s6
  %s9 = scalar_select 0, %s8, %s6
  // Predicated region
  $region2: #{_fused_block.1} parent=0 // pred_check
    _
  $region3: #{_fused_block.1} parent=0 // pred_check_branch
    %11 = sbr.rel (0) target = $region5
  $region4: #{_fused_block.1} parent=0 // pred_region
    _
  $region5: #{_fused_block.1} parent=0 // pred_fallthru
    _
  // Predicated region
  $region6: #{_fused_block.1} parent=0 // pred_check
    _
  $region7: #{_fused_block.1} parent=0 // pred_check_branch
    %13 = sbr.rel (0) target = $region9
  $region8: #{_fused_block.1} parent=0 // pred_region
    _
  $region9: #{_fused_block.1} parent=0 // pred_fallthru
    _
  // Predicated region
  $region10: #{_fused_block.1} parent=0 // pred_check
    _
  $region11: #{_fused_block.1} parent=0 // pred_check_branch
    %15 = sbr.rel (0) target = $region13
  $region12: #{_fused_block.1} parent=0 // pred_region
    _
  $region13: #{_fused_block.1} parent=0 // pred_fallthru
    _
  // Predicated region
  $region14: #{_fused_block.1} parent=0 // pred_check
    _
  $region15: #{_fused_block.1} parent=0 // pred_check_branch
    %17 = sbr.rel (0) target = $region17
  $region16: #{_fused_block.1} parent=0 // pred_region
    _
  $region17: #{_fused_block.1} parent=0 // pred_fallthru
    _
  // Predicated region
  $region18: #{_fused_block.1} parent=0 // pred_check
    _
  $region19: #{_fused_block.1} parent=0 // pred_check_branch
    %19 = sbr.rel (0) target = $region21
  $region20: #{_fused_block.1} parent=0 // pred_region
    _
  $region21: #{_fused_block.1} parent=0 // pred_fallthru
    _
  %21 = vst [vmem:[#allocation2] sm:$0x1] 0.0
  %22 = vst [vmem:[#allocation2 + $0x11] sm:$0x1] 0.0
  %23 = vst [vmem:[#allocation2 + $0x12] sm:$0x1] 0.0
  %24 = vst [vmem:[#allocation2 + $0x23] sm:$0x1] 0.0
  %v25 = vld [vmem:[%s0] sm:$0xff]
  %v26 = vld [vmem:[%s0 + $0x8] sm:$0xff]
  %v27 = vld [vmem:[%s0 + $0x10] sm:$0xff]
  %v28 = vld [vmem:[%s0 + $0x18] sm:$0xff]
  %29 = vst [vmem:[#allocation2 + $0x1] sm:$0xff] %v25
  %30 = vst [vmem:[#allocation2 + $0x9] sm:$0xff] %v26
  %31 = vst [vmem:[#allocation2 + $0x13] sm:$0xff] %v27
  %32 = vst [vmem:[#allocation2 + $0x1b] sm:$0xff] %v28
  %v33 = vld [vmem:[#allocation2] sm:$0xff]
  %v34 = vld [vmem:[#allocation2 + $0x8] sm:$0xff]
  %v35 = vpack.c.bf16 %v34, %v33
  %36 = vst [vmem:[#allocation3] sm:$0xff] %v35
  %v37 = vld [vmem:[#allocation2 + $0x1] sm:$0xff]
  %v38 = vld [vmem:[#allocation2 + $0x9] sm:$0xff]
  %v39 = vpack.c.bf16 %v38, %v37
  %40 = vst [vmem:[#allocation3 + $0x8] sm:$0xff] %v39
  %v41 = vld [vmem:[#allocation2 + $0x2] sm:$0xff]
  %v42 = vld [vmem:[#allocation2 + $0xa] sm:$0xff]
  %v43 = vpack.c.bf16 %v42, %v41
  %44 = vst [vmem:[#allocation3 + $0x10] sm:$0xff] %v43
  %v45 = vld [vmem:[#allocation2 + $0x12] sm:$0xff]
  %v46 = vld [vmem:[#allocation2 + $0x1a] sm:$0xff]
  %v47 = vpack.c.bf16 %v46, %v45
  %48 = vst [vmem:[#allocation3 + $0x18] sm:$0xff] %v47
  %v49 = vld [vmem:[#allocation2 + $0x13] sm:$0xff]
  %v50 = vld [vmem:[#allocation2 + $0x1b] sm:$0xff]
  %v51 = vpack.c.bf16 %v50, %v49
  %52 = vst [vmem:[#allocation3 + $0x20] sm:$0xff] %v51
  %v53 = vld [vmem:[#allocation2 + $0x14] sm:$0xff]
  %v54 = vld [vmem:[#allocation2 + $0x1c] sm:$0xff]
  %v55 = vpack.c.bf16 %v54, %v53
  %56 = vst [vmem:[#allocation3 + $0x28] sm:$0xff] %v55
  %v57 = vld [vmem:[#allocation3] sm:$0xff]
  %v58 = vld [vmem:[#allocation3 + $0x8] sm:$0xff]
  %v59 = vld [vmem:[#allocation3 + $0x10] sm:$0xff]
  %v60 = vld [vmem:[#allocation3 + $0x18] sm:$0xff]
  %v61 = vld [vmem:[#allocation3 + $0x20] sm:$0xff]
  %v62 = vld [vmem:[#allocation3 + $0x28] sm:$0xff]
  %v63 = vld [vmem:[%s1] sm:$0xf]
  %v64 = vld [vmem:[%s1 + $0x4] sm:$0xf]
  %v65 = vld [vmem:[%s1 + $0x8] sm:$0xf]
  %v66 = vld [vmem:[%s1 + $0xc] sm:$0xf]
  %v67 = vld [vmem:[%s1 + $0x10] sm:$0xf]
  %v68 = vld [vmem:[%s1 + $0x14] sm:$0xf]
  %v69 = vld [vmem:[%s1 + $0x18] sm:$0xf]
  %v70 = vld [vmem:[%s1 + $0x1c] sm:$0xf]
  %v71 = vld [vmem:[%s1 + $0x20] sm:$0xf]
  %v72 = vld [vmem:[%s1 + $0x24] sm:$0xf]
  %v73 = vld [vmem:[%s1 + $0x28] sm:$0xf]
  %v74 = vld [vmem:[%s1 + $0x2c] sm:$0xf]
  %v75 = vld [vmem:[%s1 + $0x30] sm:$0xf]
  %v76 = vld [vmem:[%s1 + $0x34] sm:$0xf]
  %v77 = vld [vmem:[%s1 + $0x38] sm:$0xf]
  %v78 = vld [vmem:[%s1 + $0x3c] sm:$0xf]
  %v79 = vld [vmem:[%s1 + $0x40] sm:$0xf]
  %v80 = vld [vmem:[%s1 + $0x44] sm:$0xf]
  %v81 = vld [vmem:[%s1 + $0x48] sm:$0xf]
  %v82 = vld [vmem:[%s1 + $0x4c] sm:$0xf]
  %v83 = vld [vmem:[%s1 + $0x50] sm:$0xf]
  %v84 = vld [vmem:[%s1 + $0x54] sm:$0xf]
  %v85 = vld [vmem:[%s1 + $0x58] sm:$0xf]
  %v86 = vld [vmem:[%s1 + $0x5c] sm:$0xf]
  %v87 = vld [vmem:[%s1 + $0x60] sm:$0xf]
  %v88 = vld [vmem:[%s1 + $0x64] sm:$0xf]
  %v89 = vld [vmem:[%s1 + $0x68] sm:$0xf]
  %v90 = vld [vmem:[%s1 + $0x6c] sm:$0xf]
  %v91 = vld [vmem:[%s1 + $0x70] sm:$0xf]
  %v92 = vld [vmem:[%s1 + $0x74] sm:$0xf]
  %v93 = vld [vmem:[%s1 + $0x78] sm:$0xf]
  %v94 = vld [vmem:[%s1 + $0x7c] sm:$0xf]
  %v95 = vld [vmem:[%s1 + $0x80] sm:$0xf]
  %v96 = vld [vmem:[%s1 + $0x84] sm:$0xf]
  %v97 = vld [vmem:[%s1 + $0x88] sm:$0xf]
  %v98 = vld [vmem:[%s1 + $0x8c] sm:$0xf]
  %v99 = vld [vmem:[%s1 + $0x90] sm:$0xf]
  %v100 = vld [vmem:[%s1 + $0x94] sm:$0xf]
  %v101 = vld [vmem:[%s1 + $0x98] sm:$0xf]
  %v102 = vld [vmem:[%s1 + $0x9c] sm:$0xf]
  %v103 = vld [vmem:[%s1 + $0xa0] sm:$0xf]
  %v104 = vld [vmem:[%s1 + $0xa4] sm:$0xf]
  %v105 = vld [vmem:[%s1 + $0xa8] sm:$0xf]
  %v106 = vld [vmem:[%s1 + $0xac] sm:$0xf]
  %v107 = vld [vmem:[%s1 + $0xb0] sm:$0xf]
  %v108 = vld [vmem:[%s1 + $0xb4] sm:$0xf]
  %v109 = vld [vmem:[%s1 + $0xb8] sm:$0xf]
  %v110 = vld [vmem:[%s1 + $0xbc] sm:$0xf]
  %v111 = vld [vmem:[%s3] sm:$0x1]
  %v113 = vlaneseq
  %v114 = vshrl.u32 %v113, 7
  %v115 = vsub.s32 0, %v114
  %v116 = vrot.slane %v111, %v115
  %v166 = vunpack.c.l.b16 %v63
  %v167 = vunpack.c.l.b16 %v64
  %v168 = vunpack.c.l.b16 %v65
  %v169 = vunpack.c.l.b16 %v66
  %v170 = vunpack.c.l.b16 %v67
  %v171 = vunpack.c.l.b16 %v68
  %v172 = vunpack.c.l.b16 %v69
  %v173 = vunpack.c.l.b16 %v70
  %v174 = vunpack.c.l.b16 %v71
  %v175 = vunpack.c.l.b16 %v72
  %v176 = vunpack.c.l.b16 %v73
  %v177 = vunpack.c.l.b16 %v74
  %v178 = vunpack.c.l.b16 %v75
  %v179 = vunpack.c.l.b16 %v76
  %v180 = vunpack.c.l.b16 %v77
  %v181 = vunpack.c.l.b16 %v78
  %v182 = vunpack.c.l.b16 %v79
  %v183 = vunpack.c.l.b16 %v80
  %v184 = vunpack.c.l.b16 %v81
  %v185 = vunpack.c.l.b16 %v82
  %v186 = vunpack.c.l.b16 %v83
  %v187 = vunpack.c.l.b16 %v84
  %v188 = vunpack.c.l.b16 %v85
  %v189 = vunpack.c.l.b16 %v86
  %v190 = vunpack.c.l.b16 %v87
  %v191 = vunpack.c.l.b16 %v88
  %v192 = vunpack.c.l.b16 %v89
  %v193 = vunpack.c.l.b16 %v90
  %v194 = vunpack.c.l.b16 %v91
  %v195 = vunpack.c.l.b16 %v92
  %v196 = vunpack.c.l.b16 %v93
  %v197 = vunpack.c.l.b16 %v94
  %v198 = vunpack.c.l.b16 %v95
  %v199 = vunpack.c.l.b16 %v96
  %v200 = vunpack.c.l.b16 %v97
  %v201 = vunpack.c.l.b16 %v98
  %v202 = vunpack.c.l.b16 %v99
  %v203 = vunpack.c.l.b16 %v100
  %v204 = vunpack.c.l.b16 %v101
  %v205 = vunpack.c.l.b16 %v102
  %v206 = vunpack.c.l.b16 %v103
  %v207 = vunpack.c.l.b16 %v104
  %v208 = vunpack.c.l.b16 %v105
  %v209 = vunpack.c.l.b16 %v106
  %v210 = vunpack.c.l.b16 %v107
  %v211 = vunpack.c.l.b16 %v108
  %v212 = vunpack.c.l.b16 %v109
  %v213 = vunpack.c.l.b16 %v110
  %v214 = vpack.c.b16 %v167, %v166
  %v215 = vpack.c.b16 %v169, %v168
  %v216 = vpack.c.b16 %v171, %v170
  %v217 = vpack.c.b16 %v173, %v172
  %v218 = vpack.c.b16 %v175, %v174
  %v219 = vpack.c.b16 %v177, %v176
  %v220 = vpack.c.b16 %v179, %v178
  %v221 = vpack.c.b16 %v181, %v180
  %v222 = vpack.c.b16 %v183, %v182
  %v223 = vpack.c.b16 %v185, %v184
  %v224 = vpack.c.b16 %v187, %v186
  %v225 = vpack.c.b16 %v189, %v188
  %v226 = vpack.c.b16 %v191, %v190
  %v227 = vpack.c.b16 %v193, %v192
  %v228 = vpack.c.b16 %v195, %v194
  %v229 = vpack.c.b16 %v197, %v196
  %v230 = vpack.c.b16 %v199, %v198
  %v231 = vpack.c.b16 %v201, %v200
  %v232 = vpack.c.b16 %v203, %v202
  %v233 = vpack.c.b16 %v205, %v204
  %v234 = vpack.c.b16 %v207, %v206
  %v235 = vpack.c.b16 %v209, %v208
  %v236 = vpack.c.b16 %v211, %v210
  %v237 = vpack.c.b16 %v213, %v212
  %262 = vmatprep.subr.bf16.mxu0 0
  %263 = vmatpush1.bf16.msra.mxu0 %v214
  %264 = vmatprep.subr.bf16.mxu0 0
  %265 = vmatpush1.bf16.msra.mxu0 %v215
  %266 = vmatprep.subr.bf16.mxu0 0
  %267 = vmatpush1.bf16.msra.mxu0 %v216
  %268 = vmatprep.subr.bf16.mxu0 0
  %269 = vmatpush1.bf16.msra.mxu0 %v217
  %270 = vmatprep.subr.bf16.mxu0 0
  %271 = vmatpush1.bf16.msra.mxu0 %v218
  %272 = vmatprep.subr.bf16.mxu0 0
  %273 = vmatpush1.bf16.msra.mxu0 %v219
  %274 = vmatprep.subr.bf16.mxu0 0
  %275 = vmatpush1.bf16.msra.mxu0 %v220
  %276 = vmatprep.subr.bf16.mxu0 0
  %277 = vmatpush1.bf16.msra.mxu0 %v221
  %278 = vmatprep.subr.bf16.mxu0 0
  %279 = vmatpush1.bf16.msra.mxu0 %v222
  %280 = vmatprep.subr.bf16.mxu0 0
  %281 = vmatpush1.bf16.msra.mxu0 %v223
  %282 = vmatprep.subr.bf16.mxu0 0
  %283 = vmatpush1.bf16.msra.mxu0 %v224
  %284 = vmatprep.subr.bf16.mxu0 0
  %285 = vmatpush1.bf16.msra.mxu0 %v225
  %286 = vmatprep.subr.bf16.mxu0 0
  %287 = vmatpush1.bf16.msra.mxu0 %v226
  %288 = vmatprep.subr.bf16.mxu0 0
  %289 = vmatpush1.bf16.msra.mxu0 %v227
  %290 = vmatprep.subr.bf16.mxu0 0
  %291 = vmatpush1.bf16.msra.mxu0 %v228
  %292 = vmatprep.subr.bf16.mxu0 0
  %293 = vmatpush1.bf16.msra.mxu0 %v229
  %294 = vmatprep.mubr.bf16.mxu0 %v58
  %295 = vmatmul.mubr.bf16.gmra.mrb[0].mxu0 %v57
  %v296 = vpop.f32.mrb[0].mxu0
  %v297 = vadd.f32 %v116, %v296
  %v298 = vpop.f32.mrb[0].mxu0
  %v299 = vpop.f32.mrb[0].mxu0
  %v300 = vadd.f32 %v116, %v299
  %v301 = vpop.f32.mrb[0].mxu0
  %302 = vmatprep.mubr.bf16.mxu0 %v61
  %303 = vmatmul.mubr.bf16.gmra.mrb[0].mxu0 %v60
  %v304 = vpop.f32.mrb[0].mxu0
  %v305 = vadd.f32 %v116, %v304
  %v306 = vpop.f32.mrb[0].mxu0
  %v307 = vpop.f32.mrb[0].mxu0
  %v308 = vadd.f32 %v116, %v307
  %v309 = vpop.f32.mrb[0].mxu0
  %310 = vdwg.mxu0
  %311 = vmatprep.subr.bf16.mxu0 0
  %312 = vmatpush1.bf16.msra.mxu0 %v230
  %313 = vmatprep.subr.bf16.mxu0 0
  %314 = vmatpush1.bf16.msra.mxu0 %v231
  %315 = vmatprep.subr.bf16.mxu0 0
  %316 = vmatpush1.bf16.msra.mxu0 %v232
  %317 = vmatprep.subr.bf16.mxu0 0
  %318 = vmatpush1.bf16.msra.mxu0 %v233
  %319 = vmatprep.subr.bf16.mxu0 0
  %320 = vmatpush1.bf16.msra.mxu0 %v234
  %321 = vmatprep.subr.bf16.mxu0 0
  %322 = vmatpush1.bf16.msra.mxu0 %v235
  %323 = vmatprep.subr.bf16.mxu0 0
  %324 = vmatpush1.bf16.msra.mxu0 %v236
  %325 = vmatprep.subr.bf16.mxu0 0
  %326 = vmatpush1.bf16.msra.mxu0 %v237
  %327 = vmatprep.subr.bf16.mxu0 0
  %328 = vmatpush1.bf16.msra.mxu0 0
  %329 = vmatprep.subr.bf16.mxu0 0
  %330 = vmatpush1.bf16.msra.mxu0 0
  %331 = vmatprep.subr.bf16.mxu0 0
  %332 = vmatpush1.bf16.msra.mxu0 0
  %333 = vmatprep.subr.bf16.mxu0 0
  %334 = vmatpush1.bf16.msra.mxu0 0
  %335 = vmatprep.subr.bf16.mxu0 0
  %336 = vmatpush1.bf16.msra.mxu0 0
  %337 = vmatprep.subr.bf16.mxu0 0
  %338 = vmatpush1.bf16.msra.mxu0 0
  %339 = vmatprep.subr.bf16.mxu0 0
  %340 = vmatpush1.bf16.msra.mxu0 0
  %341 = vmatprep.subr.bf16.mxu0 0
  %342 = vmatpush1.bf16.msra.mxu0 0
  %343 = vmatprep.mubr.bf16.mxu0 0
  %344 = vmatmul.mubr.bf16.gmra.mrb[0].mxu0 %v59
  %v345 = vpop.f32.mrb[0].mxu0
  %v346 = vadd.f32 %v297, %v345
  %v347 = vpop.f32.mrb[0].mxu0
  %v348 = vpop.f32.mrb[0].mxu0
  %v349 = vadd.f32 %v300, %v348
  %v350 = vpop.f32.mrb[0].mxu0
  %351 = vmatprep.mubr.bf16.mxu0 0
  %352 = vmatmul.mubr.bf16.gmra.mrb[0].mxu0 %v62
  %v353 = vpop.f32.mrb[0].mxu0
  %v354 = vadd.f32 %v305, %v353
  %v355 = vpop.f32.mrb[0].mxu0
  %v356 = vpop.f32.mrb[0].mxu0
  %v357 = vadd.f32 %v308, %v356
  %v358 = vpop.f32.mrb[0].mxu0
  %359 = vdwg.mxu0
  %v360 = vmax.f32 %v346, 0.0
  %v361 = vmax.f32 %v349, 0.0
  %v362 = vmax.f32 %v354, 0.0
  %v363 = vmax.f32 %v357, 0.0
  %364 = vst [vmem:[#allocation2 + $0x1] sm:$0xff] %v360
  %365 = vst [vmem:[#allocation2 + $0x9] sm:$0xff] %v361
  %366 = vst [vmem:[#allocation2 + $0x13] sm:$0xff] %v362
  %367 = vst [vmem:[#allocation2 + $0x1b] sm:$0xff] %v363
  %v368 = vld [vmem:[#allocation2] sm:$0xff]
  %v369 = vld [vmem:[#allocation2 + $0x8] sm:$0xff]
  %v370 = vpack.c.bf16 %v369, %v368
  %371 = vst [vmem:[#allocation3] sm:$0xff] %v370
  %v372 = vld [vmem:[#allocation2 + $0x1] sm:$0xff]
  %v373 = vld [vmem:[#allocation2 + $0x9] sm:$0xff]
  %v374 = vpack.c.bf16 %v373, %v372
  %375 = vst [vmem:[#allocation3 + $0x8] sm:$0xff] %v374
  %v376 = vld [vmem:[#allocation2 + $0x2] sm:$0xff]
  %v377 = vld [vmem:[#allocation2 + $0xa] sm:$0xff]
  %v378 = vpack.c.bf16 %v377, %v376
  %379 = vst [vmem:[#allocation3 + $0x10] sm:$0xff] %v378
  %v380 = vld [vmem:[#allocation2 + $0x12] sm:$0xff]
  %v381 = vld [vmem:[#allocation2 + $0x1a] sm:$0xff]
  %v382 = vpack.c.bf16 %v381, %v380
  %383 = vst [vmem:[#allocation3 + $0x18] sm:$0xff] %v382
  %v384 = vld [vmem:[#allocation2 + $0x13] sm:$0xff]
  %v385 = vld [vmem:[#allocation2 + $0x1b] sm:$0xff]
  %v386 = vpack.c.bf16 %v385, %v384
  %387 = vst [vmem:[#allocation3 + $0x20] sm:$0xff] %v386
  %v388 = vld [vmem:[#allocation2 + $0x14] sm:$0xff]
  %v389 = vld [vmem:[#allocation2 + $0x1c] sm:$0xff]
  %v390 = vpack.c.bf16 %v389, %v388
  %391 = vst [vmem:[#allocation3 + $0x28] sm:$0xff] %v390
  %v392 = vld [vmem:[#allocation3] sm:$0xff]
  %v393 = vld [vmem:[#allocation3 + $0x8] sm:$0xff]
  %v394 = vld [vmem:[#allocation3 + $0x10] sm:$0xff]
  %v395 = vld [vmem:[#allocation3 + $0x18] sm:$0xff]
  %v396 = vld [vmem:[#allocation3 + $0x20] sm:$0xff]
  %v397 = vld [vmem:[#allocation3 + $0x28] sm:$0xff]
  %v398 = vld [vmem:[%s2] sm:$0xf]
  %v399 = vld [vmem:[%s2 + $0x4] sm:$0xf]
  %v400 = vld [vmem:[%s2 + $0x8] sm:$0xf]
  %v401 = vld [vmem:[%s2 + $0xc] sm:$0xf]
  %v402 = vld [vmem:[%s2 + $0x10] sm:$0xf]
  %v403 = vld [vmem:[%s2 + $0x14] sm:$0xf]
  %v404 = vld [vmem:[%s2 + $0x18] sm:$0xf]
  %v405 = vld [vmem:[%s2 + $0x1c] sm:$0xf]
  %v406 = vld [vmem:[%s2 + $0x20] sm:$0xf]
  %v407 = vld [vmem:[%s2 + $0x24] sm:$0xf]
  %v408 = vld [vmem:[%s2 + $0x28] sm:$0xf]
  %v409 = vld [vmem:[%s2 + $0x2c] sm:$0xf]
  %v410 = vld [vmem:[%s2 + $0x30] sm:$0xf]
  %v411 = vld [vmem:[%s2 + $0x34] sm:$0xf]
  %v412 = vld [vmem:[%s2 + $0x38] sm:$0xf]
  %v413 = vld [vmem:[%s2 + $0x3c] sm:$0xf]
  %v414 = vld [vmem:[%s2 + $0x40] sm:$0xf]
  %v415 = vld [vmem:[%s2 + $0x44] sm:$0xf]
  %v416 = vld [vmem:[%s2 + $0x48] sm:$0xf]
  %v417 = vld [vmem:[%s2 + $0x4c] sm:$0xf]
  %v418 = vld [vmem:[%s2 + $0x50] sm:$0xf]
  %v419 = vld [vmem:[%s2 + $0x54] sm:$0xf]
  %v420 = vld [vmem:[%s2 + $0x58] sm:$0xf]
  %v421 = vld [vmem:[%s2 + $0x5c] sm:$0xf]
  %v422 = vld [vmem:[%s2 + $0x60] sm:$0xf]
  %v423 = vld [vmem:[%s2 + $0x64] sm:$0xf]
  %v424 = vld [vmem:[%s2 + $0x68] sm:$0xf]
  %v425 = vld [vmem:[%s2 + $0x6c] sm:$0xf]
  %v426 = vld [vmem:[%s2 + $0x70] sm:$0xf]
  %v427 = vld [vmem:[%s2 + $0x74] sm:$0xf]
  %v428 = vld [vmem:[%s2 + $0x78] sm:$0xf]
  %v429 = vld [vmem:[%s2 + $0x7c] sm:$0xf]
  %v430 = vld [vmem:[%s2 + $0x80] sm:$0xf]
  %v431 = vld [vmem:[%s2 + $0x84] sm:$0xf]
  %v432 = vld [vmem:[%s2 + $0x88] sm:$0xf]
  %v433 = vld [vmem:[%s2 + $0x8c] sm:$0xf]
  %v434 = vld [vmem:[%s2 + $0x90] sm:$0xf]
  %v435 = vld [vmem:[%s2 + $0x94] sm:$0xf]
  %v436 = vld [vmem:[%s2 + $0x98] sm:$0xf]
  %v437 = vld [vmem:[%s2 + $0x9c] sm:$0xf]
  %v438 = vld [vmem:[%s2 + $0xa0] sm:$0xf]
  %v439 = vld [vmem:[%s2 + $0xa4] sm:$0xf]
  %v440 = vld [vmem:[%s2 + $0xa8] sm:$0xf]
  %v441 = vld [vmem:[%s2 + $0xac] sm:$0xf]
  %v442 = vld [vmem:[%s2 + $0xb0] sm:$0xf]
  %v443 = vld [vmem:[%s2 + $0xb4] sm:$0xf]
  %v444 = vld [vmem:[%s2 + $0xb8] sm:$0xf]
  %v445 = vld [vmem:[%s2 + $0xbc] sm:$0xf]
  %v446 = vld [vmem:[%s4] sm:$0x1]
  %v448 = vlaneseq
  %v449 = vshrl.u32 %v448, 7
  %v450 = vsub.s32 0, %v449
  %v451 = vrot.slane %v446, %v450
  %v501 = vunpack.c.l.b16 %v398
  %v502 = vunpack.c.l.b16 %v399
  %v503 = vunpack.c.l.b16 %v400
  %v504 = vunpack.c.l.b16 %v401
  %v505 = vunpack.c.l.b16 %v402
  %v506 = vunpack.c.l.b16 %v403
  %v507 = vunpack.c.l.b16 %v404
  %v508 = vunpack.c.l.b16 %v405
  %v509 = vunpack.c.l.b16 %v406
  %v510 = vunpack.c.l.b16 %v407
  %v511 = vunpack.c.l.b16 %v408
  %v512 = vunpack.c.l.b16 %v409
  %v513 = vunpack.c.l.b16 %v410
  %v514 = vunpack.c.l.b16 %v411
  %v515 = vunpack.c.l.b16 %v412
  %v516 = vunpack.c.l.b16 %v413
  %v517 = vunpack.c.l.b16 %v414
  %v518 = vunpack.c.l.b16 %v415
  %v519 = vunpack.c.l.b16 %v416
  %v520 = vunpack.c.l.b16 %v417
  %v521 = vunpack.c.l.b16 %v418
  %v522 = vunpack.c.l.b16 %v419
  %v523 = vunpack.c.l.b16 %v420
  %v524 = vunpack.c.l.b16 %v421
  %v525 = vunpack.c.l.b16 %v422
  %v526 = vunpack.c.l.b16 %v423
  %v527 = vunpack.c.l.b16 %v424
  %v528 = vunpack.c.l.b16 %v425
  %v529 = vunpack.c.l.b16 %v426
  %v530 = vunpack.c.l.b16 %v427
  %v531 = vunpack.c.l.b16 %v428
  %v532 = vunpack.c.l.b16 %v429
  %v533 = vunpack.c.l.b16 %v430
  %v534 = vunpack.c.l.b16 %v431
  %v535 = vunpack.c.l.b16 %v432
  %v536 = vunpack.c.l.b16 %v433
  %v537 = vunpack.c.l.b16 %v434
  %v538 = vunpack.c.l.b16 %v435
  %v539 = vunpack.c.l.b16 %v436
  %v540 = vunpack.c.l.b16 %v437
  %v541 = vunpack.c.l.b16 %v438
  %v542 = vunpack.c.l.b16 %v439
  %v543 = vunpack.c.l.b16 %v440
  %v544 = vunpack.c.l.b16 %v441
  %v545 = vunpack.c.l.b16 %v442
  %v546 = vunpack.c.l.b16 %v443
  %v547 = vunpack.c.l.b16 %v444
  %v548 = vunpack.c.l.b16 %v445
  %v549 = vpack.c.b16 %v502, %v501
  %v550 = vpack.c.b16 %v504, %v503
  %v551 = vpack.c.b16 %v506, %v505
  %v552 = vpack.c.b16 %v508, %v507
  %v553 = vpack.c.b16 %v510, %v509
  %v554 = vpack.c.b16 %v512, %v511
  %v555 = vpack.c.b16 %v514, %v513
  %v556 = vpack.c.b16 %v516, %v515
  %v557 = vpack.c.b16 %v518, %v517
  %v558 = vpack.c.b16 %v520, %v519
  %v559 = vpack.c.b16 %v522, %v521
  %v560 = vpack.c.b16 %v524, %v523
  %v561 = vpack.c.b16 %v526, %v525
  %v562 = vpack.c.b16 %v528, %v527
  %v563 = vpack.c.b16 %v530, %v529
  %v564 = vpack.c.b16 %v532, %v531
  %v565 = vpack.c.b16 %v534, %v533
  %v566 = vpack.c.b16 %v536, %v535
  %v567 = vpack.c.b16 %v538, %v537
  %v568 = vpack.c.b16 %v540, %v539
  %v569 = vpack.c.b16 %v542, %v541
  %v570 = vpack.c.b16 %v544, %v543
  %v571 = vpack.c.b16 %v546, %v545
  %v572 = vpack.c.b16 %v548, %v547
  %597 = vmatprep.subr.bf16.mxu0 0
  %598 = vmatpush1.bf16.msra.mxu0 %v549
  %599 = vmatprep.subr.bf16.mxu0 0
  %600 = vmatpush1.bf16.msra.mxu0 %v550
  %601 = vmatprep.subr.bf16.mxu0 0
  %602 = vmatpush1.bf16.msra.mxu0 %v551
  %603 = vmatprep.subr.bf16.mxu0 0
  %604 = vmatpush1.bf16.msra.mxu0 %v552
  %605 = vmatprep.subr.bf16.mxu0 0
  %606 = vmatpush1.bf16.msra.mxu0 %v553
  %607 = vmatprep.subr.bf16.mxu0 0
  %608 = vmatpush1.bf16.msra.mxu0 %v554
  %609 = vmatprep.subr.bf16.mxu0 0
  %610 = vmatpush1.bf16.msra.mxu0 %v555
  %611 = vmatprep.subr.bf16.mxu0 0
  %612 = vmatpush1.bf16.msra.mxu0 %v556
  %613 = vmatprep.subr.bf16.mxu0 0
  %614 = vmatpush1.bf16.msra.mxu0 %v557
  %615 = vmatprep.subr.bf16.mxu0 0
  %616 = vmatpush1.bf16.msra.mxu0 %v558
  %617 = vmatprep.subr.bf16.mxu0 0
  %618 = vmatpush1.bf16.msra.mxu0 %v559
  %619 = vmatprep.subr.bf16.mxu0 0
  %620 = vmatpush1.bf16.msra.mxu0 %v560
  %621 = vmatprep.subr.bf16.mxu0 0
  %622 = vmatpush1.bf16.msra.mxu0 %v561
  %623 = vmatprep.subr.bf16.mxu0 0
  %624 = vmatpush1.bf16.msra.mxu0 %v562
  %625 = vmatprep.subr.bf16.mxu0 0
  %626 = vmatpush1.bf16.msra.mxu0 %v563
  %627 = vmatprep.subr.bf16.mxu0 0
  %628 = vmatpush1.bf16.msra.mxu0 %v564
  %629 = vmatprep.mubr.bf16.mxu0 %v393
  %630 = vmatmul.mubr.bf16.gmra.mrb[0].mxu0 %v392
  %v631 = vpop.f32.mrb[0].mxu0
  %v632 = vadd.f32 %v451, %v631
  %v633 = vpop.f32.mrb[0].mxu0
  %v634 = vpop.f32.mrb[0].mxu0
  %v635 = vadd.f32 %v451, %v634
  %v636 = vpop.f32.mrb[0].mxu0
  %637 = vmatprep.mubr.bf16.mxu0 %v396
  %638 = vmatmul.mubr.bf16.gmra.mrb[0].mxu0 %v395
  %v639 = vpop.f32.mrb[0].mxu0
  %v640 = vadd.f32 %v451, %v639
  %v641 = vpop.f32.mrb[0].mxu0
  %v642 = vpop.f32.mrb[0].mxu0
  %v643 = vadd.f32 %v451, %v642
  %v644 = vpop.f32.mrb[0].mxu0
  %645 = vdwg.mxu0
  %646 = vmatprep.subr.bf16.mxu0 0
  %647 = vmatpush1.bf16.msra.mxu0 %v565
  %648 = vmatprep.subr.bf16.mxu0 0
  %649 = vmatpush1.bf16.msra.mxu0 %v566
  %650 = vmatprep.subr.bf16.mxu0 0
  %651 = vmatpush1.bf16.msra.mxu0 %v567
  %652 = vmatprep.subr.bf16.mxu0 0
  %653 = vmatpush1.bf16.msra.mxu0 %v568
  %654 = vmatprep.subr.bf16.mxu0 0
  %655 = vmatpush1.bf16.msra.mxu0 %v569
  %656 = vmatprep.subr.bf16.mxu0 0
  %657 = vmatpush1.bf16.msra.mxu0 %v570
  %658 = vmatprep.subr.bf16.mxu0 0
  %659 = vmatpush1.bf16.msra.mxu0 %v571
  %660 = vmatprep.subr.bf16.mxu0 0
  %661 = vmatpush1.bf16.msra.mxu0 %v572
  %662 = vmatprep.subr.bf16.mxu0 0
  %663 = vmatpush1.bf16.msra.mxu0 0
  %664 = vmatprep.subr.bf16.mxu0 0
  %665 = vmatpush1.bf16.msra.mxu0 0
  %666 = vmatprep.subr.bf16.mxu0 0
  %667 = vmatpush1.bf16.msra.mxu0 0
  %668 = vmatprep.subr.bf16.mxu0 0
  %669 = vmatpush1.bf16.msra.mxu0 0
  %670 = vmatprep.subr.bf16.mxu0 0
  %671 = vmatpush1.bf16.msra.mxu0 0
  %672 = vmatprep.subr.bf16.mxu0 0
  %673 = vmatpush1.bf16.msra.mxu0 0
  %674 = vmatprep.subr.bf16.mxu0 0
  %675 = vmatpush1.bf16.msra.mxu0 0
  %676 = vmatprep.subr.bf16.mxu0 0
  %677 = vmatpush1.bf16.msra.mxu0 0
  %678 = vmatprep.mubr.bf16.mxu0 0
  %679 = vmatmul.mubr.bf16.gmra.mrb[0].mxu0 %v394
  %v680 = vpop.f32.mrb[0].mxu0
  %v681 = vadd.f32 %v632, %v680
  %v682 = vpop.f32.mrb[0].mxu0
  %v683 = vpop.f32.mrb[0].mxu0
  %v684 = vadd.f32 %v635, %v683
  %v685 = vpop.f32.mrb[0].mxu0
  %686 = vmatprep.mubr.bf16.mxu0 0
  %687 = vmatmul.mubr.bf16.gmra.mrb[0].mxu0 %v397
  %v688 = vpop.f32.mrb[0].mxu0
  %v689 = vadd.f32 %v640, %v688
  %v690 = vpop.f32.mrb[0].mxu0
  %v691 = vpop.f32.mrb[0].mxu0
  %v692 = vadd.f32 %v643, %v691
  %v693 = vpop.f32.mrb[0].mxu0
  %694 = vdwg.mxu0
  %v695 = vadd.f32 %v681, %v25
  %v696 = vadd.f32 %v684, %v26
  %v697 = vadd.f32 %v689, %v27
  %v698 = vadd.f32 %v692, %v28
  %v699 = vmax.f32 %v695, 0.0
  %v700 = vmax.f32 %v696, 0.0
  %v701 = vmax.f32 %v697, 0.0
  %v702 = vmax.f32 %v698, 0.0
  %703 = vst [vmem:[%s5] sm:$0xff] %v699
  %704 = vst [vmem:[%s5 + $0x8] sm:$0xff] %v700
  %705 = vst [vmem:[%s5 + $0x10] sm:$0xff] %v701
  %706 = vst [vmem:[%s5 + $0x18] sm:$0xff] %v702
  // Predicated region
  $region22: #{_fused_block.1} parent=0 // pred_check
    _
  $region23: #{_fused_block.1} parent=0 // pred_check_branch
    %708 = sbr.rel (0) target = $region25
  $region24: #{_fused_block.1} parent=0 // pred_region
    _
  $region25: #{_fused_block.1} parent=0 // pred_fallthru
    _
  // Predicated region
  $region26: #{_fused_block.1} parent=0 // pred_check
    _
  $region27: #{_fused_block.1} parent=0 // pred_check_branch
    %710 = sbr.rel (0) target = $region29
  $region28: #{_fused_block.1} parent=0 // pred_region
    _
  $region29: #{_fused_block.1} parent=0 // pred_fallthru
    _

</llo_original>
